<compile_context>
chip_gen: v6e
topology: v6e:2x2x1
jax: 0.10.0
libtpu: 0.0.40
codegen_flags: <defaults>
</compile_context>

<pallas_src>
import functools

import jax
import jax.numpy as jnp
from jax import lax
from jax.experimental import pallas as pl
from jax.experimental.pallas import tpu as pltpu

_LANE = 128
_SUBLANE = 8
_RESIDENT_W_BYTES_MAX = 16 << 20  # bf16 weight residency threshold (pre double-buffer)


def _round_up(x, m):
    return (x + m - 1) // m * m


# ---------------------------------------------------------------------------
# Kernels: one (batch-tile, K-tile) step of  relu(x) @ W_t + b
#   x_ref : (TB, TK)      f32
#   w_ref : resident (D_pad, C_pad) bf16   OR   streamed (TK, C_pad) bf16
#   b_ref : (1, C_pad)    f32
#   o_ref : (TB, C_pad)   f32  -- resident across K, doubles as accumulator
# ---------------------------------------------------------------------------
def _bow_kernel_resident(x_ref, w_ref, b_ref, o_ref, *, tk):
    k = pl.program_id(1)

    @pl.when(k == 0)
    def _():
        # Initialize the resident output block with the bias (bias add folded
        # into the init -> no finalize pass, no scratch accumulator).
        o_ref[...] = jnp.broadcast_to(b_ref[...], o_ref.shape).astype(o_ref.dtype)

    # ReLU on the VPU, then bf16 MXU matmul with f32 accumulation.
    # Dropout(p=0.0) is the identity -> nothing to do.
    x = jnp.maximum(x_ref[...], 0.0).astype(jnp.bfloat16)          # (TB, TK)
    off = pl.multiple_of(k * tk, tk)
    w = w_ref[pl.ds(off, tk), :]                                    # (TK, C_pad) bf16
    o_ref[...] += jnp.dot(x, w, preferred_element_type=jnp.float32)


def _bow_kernel_streamed(x_ref, w_ref, b_ref, o_ref):
    k = pl.program_id(1)

    @pl.when(k == 0)
    def _():
        o_ref[...] = jnp.broadcast_to(b_ref[...], o_ref.shape).astype(o_ref.dtype)

    x = jnp.maximum(x_ref[...], 0.0).astype(jnp.bfloat16)          # (TB, TK)
    o_ref[...] += jnp.dot(x, w_ref[...], preferred_element_type=jnp.float32)


# ---------------------------------------------------------------------------
# One-time parameter prep (hoisted out of the forward path).
# ---------------------------------------------------------------------------
def prepare_bow_params(weight, bias, *, tk_max=1024):
    """weight: (C, D) f32 (PyTorch layout), bias: (C,) f32.

    Returns a dict with the padded, transposed, bf16-cast weight (D_pad, C_pad),
    the padded f32 bias (1, C_pad), and the static tiling metadata.
    """
    C, D = weight.shape
    C_pad = _round_up(max(C, _LANE), _LANE)          # lane-dense output dim
    TK = min(tk_max, _round_up(D, _LANE))            # K tile, multiple of 128
    D_pad = _round_up(D, TK)                         # zero-pad D to the K tile

    w_t = jnp.pad(weight, ((0, C_pad - C), (0, D_pad - D))).T       # (D_pad, C_pad)
    w_t = w_t.astype(jnp.bfloat16)
    b_p = jnp.pad(bias, (0, C_pad - C)).astype(jnp.float32).reshape(1, C_pad)

    return {"w_t": w_t, "b": b_p, "tk": TK,
            "num_classes": C, "input_size": D}


def _pick_batch_tile(B, tb_max):
    if B <= _SUBLANE:
        return _SUBLANE
    # Aim for >= 2 batch programs so the "parallel" axis can shard across both
    # v7x TensorCores; keep the tile a multiple of 8 (sublane) and <= tb_max.
    half = -(-B // 2)
    return max(_SUBLANE, min(tb_max, _round_up(half, _SUBLANE)))


# ---------------------------------------------------------------------------
# Forward pass.
# ---------------------------------------------------------------------------
def bow_forward(x, params, *, tb_max=512):
    """x: (B, D) f32;  params: output of prepare_bow_params."""
    w_t, b_p = params["w_t"], params["b"]
    TK, C, D = params["tk"], params["num_classes"], params["input_size"]
    B, D_in = x.shape
    assert D_in == D, f"expected input_size={D}, got {D_in}"
    D_pad, C_pad = w_t.shape

    # Zero-pad the activations to the tile grid (exact no-op for relu/matmul).
    TB = _pick_batch_tile(B, tb_max)
    B_pad = _round_up(B, TB)
    if B_pad != B or D_pad != D:
        x = jnp.pad(x, ((0, B_pad - B), (0, D_pad - D)))

    grid = (B_pad // TB, D_pad // TK)

    # Weight residency: DMA once, reuse across every batch tile.
    w_bytes = D_pad * C_pad * w_t.dtype.itemsize
    resident = w_bytes <= _RESIDENT_W_BYTES_MAX
    if resident:
        w_spec = pl.BlockSpec((D_pad, C_pad), lambda i, k: (0, 0))
        kernel = functools.partial(_bow_kernel_resident, tk=TK)
        w_vmem = 2 * w_bytes                       # budget worst-case 2 buffers
    else:
        w_spec = pl.BlockSpec((TK, C_pad), lambda i, k: (k, 0))
        kernel = _bow_kernel_streamed
        w_vmem = 2 * TK * C_pad * w_t.dtype.itemsize

    # VMEM budget: double-buffered x tiles + resident output block (x2) +
    # weight + bias, with headroom; capped by the physical VMEM of this chip.
    need = (2 * TB * TK * x.dtype.itemsize
            + 2 * TB * C_pad * 4
            + w_vmem
            + 2 * C_pad * 4)
    try:
        phys = int(pltpu.get_tpu_info().vmem_capacity_bytes)
    except Exception:
        phys = 64 << 20                            # conservative (v7x)
    cap = min((phys * 3) // 4, 96 << 20)
    vmem_limit = int(min(max(32 << 20, need + (8 << 20)), cap))

    out_padded = pl.pallas_call(
        kernel,
        out_shape=jax.ShapeDtypeStruct((B_pad, C_pad), jnp.float32),
        grid_spec=pltpu.PrefetchScalarGridSpec(
            num_scalar_prefetch=0,
            grid=grid,
            in_specs=[
                pl.BlockSpec((TB, TK), lambda i, k: (i, k)),      # x tile
                w_spec,                                           # weight
                pl.BlockSpec((1, C_pad), lambda i, k: (0, 0)),    # bias
            ],
            out_specs=pl.BlockSpec((TB, C_pad), lambda i, k: (i, 0)),
        ),
        compiler_params=pltpu.CompilerParams(
            dimension_semantics=("parallel", "arbitrary"),
            vmem_limit_bytes=vmem_limit),
    )(x, w_t, b_p)

    return out_padded[:B, :C]


if __name__ == "__main__":
    # Small shapes consistent with the module: BOW features -> class logits.
    batch, input_size, num_classes = 8, 32, 16

    key = jax.random.PRNGKey(0)
    kx, kw, kb = jax.random.split(key, 3)

    # Deterministic synthetic parameters (Linear: weight (C, D), bias (C,)).
    x = jax.random.normal(kx, (batch, input_size), dtype=jnp.float32)
    weight = jax.random.normal(kw, (num_classes, input_size), dtype=jnp.float32) * 0.1
    bias = jax.random.normal(kb, (num_classes,), dtype=jnp.float32) * 0.1

    params = prepare_bow_params(weight, bias)           # one-time prep (cacheable)
    out = jax.block_until_ready(bow_forward(x, params))

    # Reference of the same math in bf16 (matching the in-kernel cast), plus a
    # looser check against the pure-f32 PyTorch math.
    relu_x = jnp.maximum(x, 0.0)
    ref_bf16 = lax.dot_general(
        relu_x.astype(jnp.bfloat16), weight.astype(jnp.bfloat16),
        dimension_numbers=(((1,), (1,)), ((), ())),
        preferred_element_type=jnp.float32) + bias
    ref_f32 = relu_x @ weight.T + bias

    assert out.shape == (batch, num_classes)
    assert jnp.allclose(out, ref_bf16, atol=1e-4, rtol=1e-4), \
        float(jnp.max(jnp.abs(out - ref_bf16)))
    assert jnp.allclose(out, ref_f32, atol=5e-2, rtol=5e-2), \
        float(jnp.max(jnp.abs(out - ref_f32)))

    print("KERNEL_OK")
</pallas_src>

<mosaic_0001>
module attributes {stable_mosaic.version = 11 : i64} {
  func.func @_bow_kernel_resident(%arg0: i32, %arg1: i32, %arg2: memref<8x128xf32, #tpu.memory_space<vmem>>, %arg3: memref<128x128xbf16, #tpu.memory_space<vmem>>, %arg4: memref<1x128xf32, #tpu.memory_space<vmem>>, %arg5: memref<8x128xf32, #tpu.memory_space<vmem>>) attributes {dimension_semantics = [#tpu.dimension_semantics<parallel>, #tpu.dimension_semantics<arbitrary>], iteration_bounds = array<i64: 1, 1>, scalar_prefetch = 0 : i64, scratch_operands = 0 : i64, tpu.core_type = #tpu.core_type<tc>, window_params = [{transform_indices = @transform_0, window_bounds = array<i64: 8, 128>}, {pipeline_mode = #tpu.pipeline_mode<synchronous>, transform_indices = @transform_1, window_bounds = array<i64: 128, 128>}, {pipeline_mode = #tpu.pipeline_mode<synchronous>, transform_indices = @transform_2, window_bounds = array<i64: 1, 128>}, {transform_indices = @transform_3, window_bounds = array<i64: 8, 128>}]} {
    %c0_i32 = arith.constant 0 : i32
    %0 = arith.cmpi eq, %arg1, %c0_i32 : i32
    %1 = arith.extui %0 : i1 to i32
    %c0_i32_0 = arith.constant 0 : i32
    %2 = arith.cmpi ne, %1, %c0_i32_0 : i32
    scf.if %2 {
      %c0_8 = arith.constant 0 : index
      %c0_9 = arith.constant 0 : index
      %15 = vector.load %arg4[%c0_8, %c0_9] : memref<1x128xf32, #tpu.memory_space<vmem>>, vector<1x128xf32>
      %16 = vector.shape_cast %15 : vector<1x128xf32> to vector<1x128xf32>
      %17 = vector.broadcast %16 : vector<1x128xf32> to vector<8x128xf32>
      %c0_10 = arith.constant 0 : index
      %c0_11 = arith.constant 0 : index
      %18 = vector.load %arg5[%c0_10, %c0_11] : memref<8x128xf32, #tpu.memory_space<vmem>>, vector<8x128xf32>
      tpu.vector_store %arg5[%c0_10, %c0_11], %17 {strides = array<i32>} : memref<8x128xf32, #tpu.memory_space<vmem>>, vector<8x128xf32>,
    } else {
    }
    %c0 = arith.constant 0 : index
    %c0_1 = arith.constant 0 : index
    %3 = vector.load %arg2[%c0, %c0_1] : memref<8x128xf32, #tpu.memory_space<vmem>>, vector<8x128xf32>
    %cst = arith.constant 0.000000e+00 : f32
    %4 = vector.broadcast %cst : f32 to vector<8x128xf32>
    %5 = arith.maximumf %3, %4 : vector<8x128xf32>
    %6 = arith.truncf %5 : vector<8x128xf32> to vector<8x128xbf16>
    %c128_i32 = arith.constant 128 : i32
    %7 = arith.muli %arg1, %c128_i32 : i32
    %8 = tpu.assume_multiple %7, 128 : i32
    %9 = arith.index_cast %8 : i32 to index
    %c0_2 = arith.constant 0 : index
    %10 = vector.load %arg3[%9, %c0_2] : memref<128x128xbf16, #tpu.memory_space<vmem>>, vector<128x128xbf16>
    %c0_3 = arith.constant 0 : index
    %c0_4 = arith.constant 0 : index
    %11 = vector.load %arg5[%c0_3, %c0_4] : memref<8x128xf32, #tpu.memory_space<vmem>>, vector<8x128xf32>
    %cst_5 = arith.constant dense<0.000000e+00> : vector<8x128xf32>
    %12 = tpu.matmul %6, %10, %cst_5 {dimension_numbers = #tpu.dot_dimension_numbers<[1], [0], [0], [1], [0, 0, 1, 1], [], []>} : vector<8x128xbf16>, vector<128x128xbf16>, vector<8x128xf32> -> vector<8x128xf32>
    %13 = arith.addf %11, %12 : vector<8x128xf32>
    %c0_6 = arith.constant 0 : index
    %c0_7 = arith.constant 0 : index
    %14 = vector.load %arg5[%c0_6, %c0_7] : memref<8x128xf32, #tpu.memory_space<vmem>>, vector<8x128xf32>
    tpu.vector_store %arg5[%c0_6, %c0_7], %13 {strides = array<i32>} : memref<8x128xf32, #tpu.memory_space<vmem>>, vector<8x128xf32>,
    return
  }
  func.func @transform_0(%arg0: i32, %arg1: i32) -> (i32, i32) {
    %c0_i32 = arith.constant 0 : i32
    return %arg0, %arg1 : i32, i32
  }
  func.func @transform_1(%arg0: i32, %arg1: i32) -> (i32, i32) {
    %c0_i32 = arith.constant 0 : i32
    %c0_i32_0 = arith.constant 0 : i32
    %c0_i32_1 = arith.constant 0 : i32
    return %c0_i32, %c0_i32_0 : i32, i32
  }
  func.func @transform_2(%arg0: i32, %arg1: i32) -> (i32, i32) {
    %c0_i32 = arith.constant 0 : i32
    %c0_i32_0 = arith.constant 0 : i32
    %c0_i32_1 = arith.constant 0 : i32
    return %c0_i32, %c0_i32_0 : i32, i32
  }
  func.func @transform_3(%arg0: i32, %arg1: i32) -> (i32, i32) {
    %c0_i32 = arith.constant 0 : i32
    %c0_i32_0 = arith.constant 0 : i32
    return %arg0, %c0_i32 : i32, i32
  }
}

</mosaic_0001>

<llo_original>
// kernel: tpu_custom_call.1
$region0: #{tpu_custom_call.1}
  #allocation0 [shape = 'u32[]', space=smem, size = 0x4, offset = 0x4, fixed_abs, tag = 'smem constant byte address 0x4 - core index']
  #allocation1 [shape = 'u32[144,128]{1,0:T(1,128)}', space=vmem, size = 0x12000, scoped, tag = 'internal scratch']
  %s0 = inlined_call_operand.hbm [shape: f32[8,128], index: 0, kind: input, shape index: {}]
  %s1 = inlined_call_operand.hbm [shape: bf16[128,128], index: 1, kind: input, shape index: {}]
  %s2 = inlined_call_operand.vmem [shape: f32[1,128], index: 2, kind: input, shape index: {}]
  %s3 = inlined_call_operand.hbm [shape: f32[8,128], index: 3, kind: output, shape index: {}]
  %s4 = sld [smem:[#allocation0]]
  $region34: #{tpu_custom_call.1} parent=0
    _
  %s6 = ssub.s32 1, %s4
  %s7 = scalar_select 0, %s6, %s4
  $region1: #{tpu_custom_call.1} parent=0
    #allocation2 [shape = 'u8[4096]{0}', space=vmem, size = 0x1000, scoped, tag = 'input window, operand 0, single buffered']
    #allocation3 [shape = 's32[1]{0}', space=sflag, size = 0x4, scoped, tag = 'scoped memory for tpu_custom_call.1']
    #allocation4 [shape = 's32[1]{0}', space=sflag, size = 0x4, scoped, tag = 'scoped memory for tpu_custom_call.1']
    #allocation5 [shape = 'u8[32768]{0}', space=vmem, size = 0x8000, scoped, tag = 'input window, operand 1, single buffered']
    #allocation6 [shape = 's32[1]{0}', space=sflag, size = 0x4, scoped, tag = 'scoped memory for tpu_custom_call.1']
    #allocation7 [shape = 'u8[4096]{0}', space=vmem, size = 0x1000, scoped, tag = 'output window, operand 0, single buffered']
    %8 = vsyncpa [#allocation3], 0
    %9 = vsyncpa [#allocation6], 0
    %10 = vsyncpa [#allocation4], 0
    // Predicated region
    $region2: #{tpu_custom_call.1} parent=1 // pred_check
      _
    $region3: #{tpu_custom_call.1} parent=1 // pred_check_branch
      %12 = sbr.rel (0) target = $region5
    $region4: #{tpu_custom_call.1} parent=1 // pred_region
      %s14 = ssub.s32 128, 128
      %15 = vsyncadd [#allocation3], %s14
      %s17 = sshll.u32 [#allocation2], 4
      %s18 = int_to_ptr.vmem [resolvable:$true] %s17
      %20 = dma.hbm_to_vmem [thread:$0]  %s0, 128, %s18, [#allocation3]
    $region5: #{tpu_custom_call.1} parent=1 // pred_fallthru
      _
    // Predicated region
    $region6: #{tpu_custom_call.1} parent=1 // pred_check
      _
    $region7: #{tpu_custom_call.1} parent=1 // pred_check_branch
      %22 = sbr.rel (0) target = $region9
    $region8: #{tpu_custom_call.1} parent=1 // pred_region
      %s24 = ssub.s32 1024, 1024
      %25 = vsyncadd [#allocation6], %s24
      %s26 = sshll.u32 [#allocation5], 4
      %s27 = int_to_ptr.vmem [resolvable:$true] %s26
      %32 = dma.hbm_to_vmem [thread:$0]  %s1, 1024, %s27, [#allocation6], 64, 64, 4
    $region9: #{tpu_custom_call.1} parent=1 // pred_fallthru
      _
    // Predicated region
    $region10: #{tpu_custom_call.1} parent=1 // pred_check
      _
    $region11: #{tpu_custom_call.1} parent=1 // pred_check_branch
      %34 = sbr.rel (0) target = $region13
    $region12: #{tpu_custom_call.1} parent=1 // pred_region
      _
    $region13: #{tpu_custom_call.1} parent=1 // pred_fallthru
      _
    // Predicated region
    $region14: #{tpu_custom_call.1} parent=1 // pred_check
      _
    $region15: #{tpu_custom_call.1} parent=1 // pred_check_branch
      %36 = sbr.rel (0) target = $region17
    $region16: #{tpu_custom_call.1} parent=1 // pred_region
      %37 = dma.done [#allocation3], 128
    $region17: #{tpu_custom_call.1} parent=1 // pred_fallthru
      _
    // Predicated region
    $region18: #{tpu_custom_call.1} parent=1 // pred_check
      _
    $region19: #{tpu_custom_call.1} parent=1 // pred_check_branch
      %39 = sbr.rel (0) target = $region21
    $region20: #{tpu_custom_call.1} parent=1 // pred_region
      %40 = dma.done [#allocation6], 1024
    $region21: #{tpu_custom_call.1} parent=1 // pred_fallthru
      _
    %p42 = scmp.eq.s32.totalorder 0, 0
    // Predicated region
    $region22: #{tpu_custom_call.1} parent=1 // pred_check
      %p43 = pneg %p42
    $region23: #{tpu_custom_call.1} parent=1 // pred_check_branch
      %45 = sbr.rel (%p43) target = $region25
    $region24: #{tpu_custom_call.1} parent=1 // pred_region
      %v46 = vld [vmem:[%s2] sm:$0x1]
      %v48 = vlaneseq
      %v49 = vshrl.u32 %v48, 7
      %v50 = vsub.s32 0, %v49
      %v51 = vrot.slane %v46, %v50
      %53 = vst [vmem:[#allocation7] sm:$0xff] %v51
    $region25: #{tpu_custom_call.1} parent=1 // pred_fallthru
      _
    %v54 = vld [vmem:[#allocation2] sm:$0xff]
    %v55 = vmax.f32 %v54, 0.0
    %v56 = vpack.c.bf16 %v55, %v55
    %s57 = smul.u32 0, 128
    %s58 = sshra.s32 %s57, 3
    %s59 = sand.u32 %s57, 7
    %s60 = smul.addr %s58, 4
    %s61 = scalar_lea.vmem [#allocation5], %s60
    %v62 = vld [vmem:[%s61] sm:$0xf]
    %v63 = vld [vmem:[%s61 + $0x4] sm:$0xf]
    %v64 = vld [vmem:[%s61 + $0x8] sm:$0xf]
    %v65 = vld [vmem:[%s61 + $0xc] sm:$0xf]
    %v66 = vld [vmem:[%s61 + $0x10] sm:$0xf]
    %v67 = vld [vmem:[%s61 + $0x14] sm:$0xf]
    %v68 = vld [vmem:[%s61 + $0x18] sm:$0xf]
    %v69 = vld [vmem:[%s61 + $0x1c] sm:$0xf]
    %v70 = vld [vmem:[%s61 + $0x20] sm:$0xf]
    %v71 = vld [vmem:[%s61 + $0x24] sm:$0xf]
    %v72 = vld [vmem:[%s61 + $0x28] sm:$0xf]
    %v73 = vld [vmem:[%s61 + $0x2c] sm:$0xf]
    %v74 = vld [vmem:[%s61 + $0x30] sm:$0xf]
    %v75 = vld [vmem:[%s61 + $0x34] sm:$0xf]
    %v76 = vld [vmem:[%s61 + $0x38] sm:$0xf]
    %v77 = vld [vmem:[%s61 + $0x3c] sm:$0xf]
    %v78 = vld [vmem:[#allocation7] sm:$0xff]
    %v95 = vunpack.c.l.b16 %v62
    %v96 = vunpack.c.l.b16 %v63
    %v97 = vunpack.c.l.b16 %v64
    %v98 = vunpack.c.l.b16 %v65
    %v99 = vunpack.c.l.b16 %v66
    %v100 = vunpack.c.l.b16 %v67
    %v101 = vunpack.c.l.b16 %v68
    %v102 = vunpack.c.l.b16 %v69
    %v103 = vunpack.c.l.b16 %v70
    %v104 = vunpack.c.l.b16 %v71
    %v105 = vunpack.c.l.b16 %v72
    %v106 = vunpack.c.l.b16 %v73
    %v107 = vunpack.c.l.b16 %v74
    %v108 = vunpack.c.l.b16 %v75
    %v109 = vunpack.c.l.b16 %v76
    %v110 = vunpack.c.l.b16 %v77
    %v111 = vpack.c.b16 %v96, %v95
    %v112 = vpack.c.b16 %v98, %v97
    %v113 = vpack.c.b16 %v100, %v99
    %v114 = vpack.c.b16 %v102, %v101
    %v115 = vpack.c.b16 %v104, %v103
    %v116 = vpack.c.b16 %v106, %v105
    %v117 = vpack.c.b16 %v108, %v107
    %v118 = vpack.c.b16 %v110, %v109
    %127 = vmatprep.subr.bf16.mxu0 0
    %128 = vmatpush1.bf16.msra.mxu0 %v118
    %129 = vmatprep.subr.bf16.mxu0 0
    %130 = vmatpush1.bf16.msra.mxu0 %v117
    %131 = vmatprep.subr.bf16.mxu0 0
    %132 = vmatpush1.bf16.msra.mxu0 %v116
    %133 = vmatprep.subr.bf16.mxu0 0
    %134 = vmatpush1.bf16.msra.mxu0 %v115
    %135 = vmatprep.subr.bf16.mxu0 0
    %136 = vmatpush1.bf16.msra.mxu0 %v114
    %137 = vmatprep.subr.bf16.mxu0 0
    %138 = vmatpush1.bf16.msra.mxu0 %v113
    %139 = vmatprep.subr.bf16.mxu0 0
    %140 = vmatpush1.bf16.msra.mxu0 %v112
    %141 = vmatprep.subr.bf16.mxu0 0
    %142 = vmatpush1.bf16.msra.mxu0 %v111
    %143 = vmatprep.subr.bf16.mxu0 0
    %144 = vmatpush2.bf16.msra.mxu0 0
    %145 = vmatprep.subr.bf16.mxu0 0
    %146 = vmatpush2.bf16.msra.mxu0 0
    %147 = vmatprep.subr.bf16.mxu0 0
    %148 = vmatpush2.bf16.msra.mxu0 0
    %149 = vmatprep.subr.bf16.mxu0 0
    %150 = vmatpush2.bf16.msra.mxu0 0
    %151 = vmatprep.subr.bf16.mxu0 0
    %152 = vmatpush2.bf16.msra.mxu0 0
    %153 = vmatprep.subr.bf16.mxu0 0
    %154 = vmatpush2.bf16.msra.mxu0 0
    %155 = vmatprep.subr.bf16.mxu0 0
    %156 = vmatpush2.bf16.msra.mxu0 0
    %157 = vmatprep.subr.bf16.mxu0 0
    %158 = vmatpush2.bf16.msra.mxu0 0
    %159 = vmatprep.mubr.bf16.mxu0 0
    %160 = vmatmul.mubr.bf16.gmra.mxu0 %v56
    %v161 = vpop.f32.mrf.mxu0
    %v162 = vadd.f32 0.0, %v161
    %v163 = vpop.f32.mrf.mxu0
    %v164 = vpop.f32.mrf.mxu0
    %v165 = vpop.f32.mrf.mxu0
    %166 = vdwg.mxu0
    %v167 = vadd.f32 %v78, %v162
    %168 = vst [vmem:[#allocation7] sm:$0xff] %v167
    // Predicated region
    $region26: #{tpu_custom_call.1} parent=1 // pred_check
      _
    $region27: #{tpu_custom_call.1} parent=1 // pred_check_branch
      %170 = sbr.rel (0) target = $region29
    $region28: #{tpu_custom_call.1} parent=1 // pred_region
      %s172 = ssub.s32 128, 128
      %173 = vsyncadd [#allocation4], %s172
      %s175 = sshll.u32 [#allocation7], 4
      %s176 = int_to_ptr.vmem [resolvable:$true] %s175
      %178 = dma.vmem_to_hbm [thread:$0]  %s176, 128, %s3, [#allocation4]
    $region29: #{tpu_custom_call.1} parent=1 // pred_fallthru
      _
    // Predicated region
    $region30: #{tpu_custom_call.1} parent=1 // pred_check
      _
    $region31: #{tpu_custom_call.1} parent=1 // pred_check_branch
      %180 = sbr.rel (0) target = $region33
    $region32: #{tpu_custom_call.1} parent=1 // pred_region
      %181 = dma.done [#allocation4], 128
    $region33: #{tpu_custom_call.1} parent=1 // pred_fallthru
      _
    %182 = vsyncpa [#allocation3], 1
    %183 = vsyncpa [#allocation6], 1
    %184 = vsyncpa [#allocation4], 1

</llo_original>
